<compile_context>
chip_gen: v5e
topology: v5e:2x2
jax: 0.10.0
libtpu: 0.0.40
codegen_flags: <defaults>
</compile_context>

<pallas_src>
import numpy as np

import jax
import jax.numpy as jnp
from jax.experimental import pallas as pl
from jax.experimental.pallas import tpu as pltpu


def _masked_clamp_kernel(mask_ref, img_ref, out_ref):
    """Elementwise hot path: out = clamp(img * mask, 0, 1).

    mask_ref: (1, col_tile) block (broadcasts implicitly over the sublane dim).
    img_ref / out_ref: (nc_tile, col_tile) blocks.
    """
    out_ref[...] = jnp.clip(img_ref[...] * mask_ref[...], 0.0, 1.0)


def _build_inpaint_mask(h, w, mode, inpaint_size, dtype):
    """Static (H, W) hole mask; mirrors the PyTorch slice-assign exactly."""
    mask = np.ones((h, w), dtype=np.float32)
    if mode == "center":
        ih, iw = h // 8, w // 8
        cx, cy = int(0.5 * h), int(0.5 * w)
        mask[cx - ih:cx + ih, cy - iw:cy + iw] = 0.0
    elif mode == "fixed":
        s = inpaint_size
        for fx, fy in [(1 / 2, 1 / 2), (1 / 4, 1 / 4), (1 / 4, 3 / 4),
                       (3 / 4, 1 / 4), (3 / 4, 3 / 4)]:
            cx, cy = int(fx * h), int(fy * w)
            mask[cx - s:cx + s, cy - s:cy + s] = 0.0
    # else: no holes -> all ones (still takes the 'inpanting' clamp path)
    return jnp.asarray(mask, dtype=dtype)


class TransformInput:
    """JAX/Pallas port of hnerv_utils.TransformInput (no parameters)."""

    # Per-buffer tile budget (~4 MiB hits the measured HBM-roofline sweet spot
    # for mem-bound elementwise kernels; 2 streams x 2 buffers stays small).
    _TARGET_TILE_BYTES = 4 * 1024 * 1024

    def __init__(self, inpanting: str):
        self.inpanting = inpanting
        self.inpaint_size = 0
        if "inpanting_fixed" in self.inpanting:
            self.inpaint_size = int(self.inpanting.split("_")[-1]) // 2

    @staticmethod
    def _pick_tiles(nc, plane, itemsize, target):
        """Choose (nc_tile, col_tile) satisfying the (8, 128) block rule."""
        # Column (lane) tile: full plane when 8 rows of it fit the budget,
        # otherwise a multiple of 128 (partial last block is fine).
        if plane * itemsize * 8 <= target or nc == 1:
            col_tile = plane
        else:
            col_tile = max(128, (target // (8 * itemsize)) // 128 * 128)
            col_tile = min(col_tile, plane)
        # Row (sublane) tile: multiple of 8, or the full extent.
        rows_budget = max(1, target // max(col_tile * itemsize, 1))
        if rows_budget >= nc:
            nc_tile = nc
        else:
            nc_tile = min(nc, max(8, (rows_budget // 8) * 8))
        return nc_tile, col_tile

    def __call__(self, img, idx):
        del idx  # unused in the reference forward as well
        n, c, h, w = img.shape

        # Non-inpainting path: no kernel needed (pure aliases + a ones fill).
        if "inpanting" not in self.inpanting:
            return img, img, jnp.ones_like(img)

        if "center" in self.inpanting:
            mode = "center"
        elif "fixed" in self.inpanting:
            mode = "fixed"
        else:
            mode = "none_hole"

        mask2d = _build_inpaint_mask(h, w, mode, self.inpaint_size, img.dtype)

        # Lane-dense 2-D layout: rows = N*C, columns = H*W (free reshape).
        nc, plane = n * c, h * w
        img2 = img.reshape(nc, plane)
        mask_row = mask2d.reshape(1, plane)

        itemsize = jnp.dtype(img.dtype).itemsize
        nc_tile, col_tile = self._pick_tiles(nc, plane, itemsize,
                                             self._TARGET_TILE_BYTES)
        grid = (pl.cdiv(nc, nc_tile), pl.cdiv(plane, col_tile))

        tile_bytes = nc_tile * col_tile * itemsize
        # 2 streams (img in, input out) x 2 buffers + mask row x 2 + slack.
        needed = 4 * tile_bytes + 2 * col_tile * itemsize + (4 << 20)
        vmem_limit = int(min(max(needed, 24 << 20), 56 << 20))

        out2 = pl.pallas_call(
            _masked_clamp_kernel,
            out_shape=jax.ShapeDtypeStruct((nc, plane), img.dtype),
            grid=grid,
            in_specs=[
                pl.BlockSpec((1, col_tile), lambda i, j: (0, j)),        # mask row
                pl.BlockSpec((nc_tile, col_tile), lambda i, j: (i, j)),  # img tiles
            ],
            out_specs=pl.BlockSpec((nc_tile, col_tile), lambda i, j: (i, j)),
            compiler_params=pltpu.CompilerParams(
                dimension_semantics=("parallel", "parallel"),
                vmem_limit_bytes=vmem_limit,
            ),
        )(mask_row, img2)

        inp = out2.reshape(n, c, h, w)
        # gt = img.clone() in PyTorch; JAX arrays are immutable, so the input
        # array itself is semantically identical (and saves a full HBM write).
        return inp, img, mask2d


def _reference(img, mode, inpaint_size):
    """Pure-JAX reference (mirrors the PyTorch forward) for a sanity check."""
    h, w = img.shape[-2:]
    rows = jnp.arange(h)[:, None]
    cols = jnp.arange(w)[None, :]
    hole = jnp.zeros((h, w), dtype=bool)
    if mode == "center":
        ih, iw = h // 8, w // 8
        cx, cy = int(0.5 * h), int(0.5 * w)
        hole = ((rows >= cx - ih) & (rows < cx + ih)
                & (cols >= cy - iw) & (cols < cy + iw))
    elif mode == "fixed":
        s = inpaint_size
        for fx, fy in [(1 / 2, 1 / 2), (1 / 4, 1 / 4), (1 / 4, 3 / 4),
                       (3 / 4, 1 / 4), (3 / 4, 3 / 4)]:
            cx, cy = int(fx * h), int(fy * w)
            hole = hole | ((rows >= cx - s) & (rows < cx + s)
                           & (cols >= cy - s) & (cols < cy + s))
    mask = jnp.where(hole, 0.0, 1.0).astype(img.dtype)
    inp = jnp.clip(img * mask[None, None], 0.0, 1.0)
    return inp, img, mask


if __name__ == "__main__":
    key = jax.random.PRNGKey(0)
    # Small NCHW input, consistent with an image tensor fed to this module.
    img = jax.random.uniform(key, (2, 4, 16, 16), dtype=jnp.float32)
    idx = jnp.arange(2, dtype=jnp.int32)

    # --- 'inpanting_center' mode ---
    tf_center = TransformInput("inpanting_center")
    inp_c, gt_c, mask_c = jax.block_until_ready(tf_center(img, idx))
    ref_inp, ref_gt, ref_mask = _reference(img, "center", 0)
    assert jnp.allclose(inp_c, ref_inp) and jnp.allclose(gt_c, ref_gt)
    assert jnp.allclose(mask_c, ref_mask)

    # --- 'inpanting_fixed_4' mode (inpaint_size = 2) ---
    tf_fixed = TransformInput("inpanting_fixed_4")
    inp_f, gt_f, mask_f = jax.block_until_ready(tf_fixed(img, idx))
    ref_inp, ref_gt, ref_mask = _reference(img, "fixed", 2)
    assert jnp.allclose(inp_f, ref_inp) and jnp.allclose(gt_f, ref_gt)
    assert jnp.allclose(mask_f, ref_mask)

    # --- no-inpainting mode (no kernel launch) ---
    tf_none = TransformInput("none")
    inp_n, gt_n, mask_n = jax.block_until_ready(tf_none(img, idx))
    assert jnp.allclose(inp_n, img) and jnp.allclose(gt_n, img)
    assert jnp.allclose(mask_n, jnp.ones_like(img))

    print("KERNEL_OK")
</pallas_src>

<mosaic_0001>
module attributes {stable_mosaic.version = 11 : i64} {
  func.func @_masked_clamp_kernel(%arg0: i32, %arg1: i32, %arg2: memref<1x256xf32, #tpu.memory_space<vmem>>, %arg3: memref<8x256xf32, #tpu.memory_space<vmem>>, %arg4: memref<8x256xf32, #tpu.memory_space<vmem>>) attributes {dimension_semantics = [#tpu.dimension_semantics<parallel>, #tpu.dimension_semantics<parallel>], iteration_bounds = array<i64: 1, 1>, scalar_prefetch = 0 : i64, scratch_operands = 0 : i64, tpu.core_type = #tpu.core_type<tc>, window_params = [{transform_indices = @transform_0, window_bounds = array<i64: 1, 256>}, {transform_indices = @transform_1, window_bounds = array<i64: 8, 256>}, {transform_indices = @transform_2, window_bounds = array<i64: 8, 256>}]} {
    %c0 = arith.constant 0 : index
    %c0_0 = arith.constant 0 : index
    %0 = vector.load %arg3[%c0, %c0_0] : memref<8x256xf32, #tpu.memory_space<vmem>>, vector<8x256xf32>
    %c0_1 = arith.constant 0 : index
    %c0_2 = arith.constant 0 : index
    %1 = vector.load %arg2[%c0_1, %c0_2] : memref<1x256xf32, #tpu.memory_space<vmem>>, vector<1x256xf32>
    %2 = vector.broadcast %1 : vector<1x256xf32> to vector<8x256xf32>
    %3 = arith.mulf %0, %2 : vector<8x256xf32>
    %cst = arith.constant 0.000000e+00 : f32
    %cst_3 = arith.constant 1.000000e+00 : f32
    %4 = vector.broadcast %cst : f32 to vector<8x256xf32>
    %5 = arith.maximumf %4, %3 : vector<8x256xf32>
    %6 = vector.broadcast %cst_3 : f32 to vector<8x256xf32>
    %7 = arith.minimumf %6, %5 : vector<8x256xf32>
    %c0_4 = arith.constant 0 : index
    %c0_5 = arith.constant 0 : index
    %8 = vector.load %arg4[%c0_4, %c0_5] : memref<8x256xf32, #tpu.memory_space<vmem>>, vector<8x256xf32>
    tpu.vector_store %arg4[%c0_4, %c0_5], %7 {strides = array<i32>} : memref<8x256xf32, #tpu.memory_space<vmem>>, vector<8x256xf32>,
    return
  }
  func.func @transform_0(%arg0: i32, %arg1: i32) -> (i32, i32) {
    %c0_i32 = arith.constant 0 : i32
    %c0_i32_0 = arith.constant 0 : i32
    return %c0_i32, %arg1 : i32, i32
  }
  func.func @transform_1(%arg0: i32, %arg1: i32) -> (i32, i32) {
    %c0_i32 = arith.constant 0 : i32
    return %arg0, %arg1 : i32, i32
  }
  func.func @transform_2(%arg0: i32, %arg1: i32) -> (i32, i32) {
    %c0_i32 = arith.constant 0 : i32
    return %arg0, %arg1 : i32, i32
  }
}

</mosaic_0001>

<llo_original>
// kernel: tpu_custom_call.1
$region0: #{tpu_custom_call.1}
  #allocation0 [shape = 'u32[]', space=smem, size = 0x4, offset = 0x4, fixed_abs, tag = 'smem constant byte address 0x4 - core index']
  #allocation1 [shape = 'u32[72,128]{1,0:T(1,128)}', space=vmem, size = 0x9000, scoped, tag = 'internal scratch']
  %s0 = inlined_call_operand.hbm [shape: f32[1,256], index: 0, kind: input, shape index: {}]
  %s1 = inlined_call_operand.hbm [shape: f32[8,256], index: 1, kind: input, shape index: {}]
  %s2 = inlined_call_operand.hbm [shape: f32[8,256], index: 2, kind: output, shape index: {}]
  %s3 = sld [smem:[#allocation0]]
  $region26: #{tpu_custom_call.1} parent=0
    _
  %s5 = ssub.s32 1, %s3
  %s6 = scalar_select 0, %s5, %s3
  $region1: #{tpu_custom_call.1} parent=0
    #allocation2 [shape = 'u8[1024]{0}', space=vmem, size = 0x400, scoped, tag = 'input window, operand 0, single buffered']
    #allocation3 [shape = 's32[1]{0}', space=sflag, size = 0x4, scoped, tag = 'scoped memory for tpu_custom_call.1']
    #allocation4 [shape = 's32[1]{0}', space=sflag, size = 0x4, scoped, tag = 'scoped memory for tpu_custom_call.1']
    #allocation5 [shape = 'u8[8192]{0}', space=vmem, size = 0x2000, scoped, tag = 'input window, operand 1, single buffered']
    #allocation6 [shape = 's32[1]{0}', space=sflag, size = 0x4, scoped, tag = 'scoped memory for tpu_custom_call.1']
    #allocation7 [shape = 'u8[8192]{0}', space=vmem, size = 0x2000, scoped, tag = 'output window, operand 0, single buffered']
    %7 = vsyncpa [#allocation3], 0
    %8 = vsyncpa [#allocation6], 0
    %9 = vsyncpa [#allocation4], 0
    // Predicated region
    $region2: #{tpu_custom_call.1} parent=1 // pred_check
      _
    $region3: #{tpu_custom_call.1} parent=1 // pred_check_branch
      %11 = sbr.rel (0) target = $region5
    $region4: #{tpu_custom_call.1} parent=1 // pred_region
      %13 = vsyncadd [#allocation3], 0
      %s15 = sshll.u32 %s0, 4
      %s16 = int_to_ptr.hbm [resolvable:$true] %s15
      %s17 = sshll.u32 [#allocation2], 4
      %s18 = int_to_ptr.vmem [resolvable:$true] %s17
      %20 = dma.hbm_to_vmem [thread:$0]  %s16, 32, %s18, [#allocation3]
    $region5: #{tpu_custom_call.1} parent=1 // pred_fallthru
      _
    // Predicated region
    $region6: #{tpu_custom_call.1} parent=1 // pred_check
      _
    $region7: #{tpu_custom_call.1} parent=1 // pred_check_branch
      %22 = sbr.rel (0) target = $region9
    $region8: #{tpu_custom_call.1} parent=1 // pred_region
      %24 = vsyncadd [#allocation6], 0
      %s26 = sshll.u32 %s1, 4
      %s27 = int_to_ptr.hbm [resolvable:$true] %s26
      %s28 = sshll.u32 [#allocation5], 4
      %s29 = int_to_ptr.vmem [resolvable:$true] %s28
      %31 = dma.hbm_to_vmem [thread:$0]  %s27, 256, %s29, [#allocation6]
    $region9: #{tpu_custom_call.1} parent=1 // pred_fallthru
      _
    // Predicated region
    $region10: #{tpu_custom_call.1} parent=1 // pred_check
      _
    $region11: #{tpu_custom_call.1} parent=1 // pred_check_branch
      %33 = sbr.rel (0) target = $region13
    $region12: #{tpu_custom_call.1} parent=1 // pred_region
      %35 = dma.done [#allocation3], 32
    $region13: #{tpu_custom_call.1} parent=1 // pred_fallthru
      _
    // Predicated region
    $region14: #{tpu_custom_call.1} parent=1 // pred_check
      _
    $region15: #{tpu_custom_call.1} parent=1 // pred_check_branch
      %37 = sbr.rel (0) target = $region17
    $region16: #{tpu_custom_call.1} parent=1 // pred_region
      %39 = dma.done [#allocation6], 256
    $region17: #{tpu_custom_call.1} parent=1 // pred_fallthru
      _
    %v40 = vld [vmem:[#allocation5] sm:$0xff]
    %v41 = vld [vmem:[#allocation5 + $0x8] sm:$0xff]
    %v42 = vld [vmem:[#allocation2] sm:$0x3]
    %v44 = vperm.slane %v42, 0
    %v45 = vperm.slane %v42, 1
    %v48 = vmul.f32 %v40, %v44
    %v49 = vmul.f32 %v41, %v45
    %v50 = vmax.f32 %v48, 0.0
    %v51 = vmax.f32 %v49, 0.0
    %v52 = vmin.f32 %v50, 1.0
    %v53 = vmin.f32 %v51, 1.0
    %54 = vst [vmem:[#allocation7] sm:$0xff] %v52
    %55 = vst [vmem:[#allocation7 + $0x8] sm:$0xff] %v53
    // Predicated region
    $region18: #{tpu_custom_call.1} parent=1 // pred_check
      _
    $region19: #{tpu_custom_call.1} parent=1 // pred_check_branch
      %57 = sbr.rel (0) target = $region21
    $region20: #{tpu_custom_call.1} parent=1 // pred_region
      %59 = vsyncadd [#allocation4], 0
      %s61 = sshll.u32 [#allocation7], 4
      %s62 = int_to_ptr.vmem [resolvable:$true] %s61
      %s63 = sshll.u32 %s2, 4
      %s64 = int_to_ptr.hbm [resolvable:$true] %s63
      %66 = dma.vmem_to_hbm [thread:$0]  %s62, 256, %s64, [#allocation4]
    $region21: #{tpu_custom_call.1} parent=1 // pred_fallthru
      _
    // Predicated region
    $region22: #{tpu_custom_call.1} parent=1 // pred_check
      _
    $region23: #{tpu_custom_call.1} parent=1 // pred_check_branch
      %68 = sbr.rel (0) target = $region25
    $region24: #{tpu_custom_call.1} parent=1 // pred_region
      %70 = dma.done [#allocation4], 256
    $region25: #{tpu_custom_call.1} parent=1 // pred_fallthru
      _
    %71 = vsyncpa [#allocation3], 1
    %72 = vsyncpa [#allocation6], 1
    %73 = vsyncpa [#allocation4], 1

</llo_original>
